<compile_context>
chip_gen: v7x
topology: tpu7x:2x2x1
jax: 0.10.0
libtpu: 0.0.40
codegen_flags: <defaults>
</compile_context>

<pallas_src>
import functools
import math

import jax
import jax.numpy as jnp
from jax import lax
from jax.experimental import pallas as pl
from jax.experimental.pallas import tpu as pltpu


# ----------------------------------------------------------------------------
# Small helpers
# ----------------------------------------------------------------------------
def _gelu(x):
    # TODO(synk): tanh approximation of GELU; HF's exact erf GELU differs <~1e-3.
    c = math.sqrt(2.0 / math.pi)
    return 0.5 * x * (1.0 + jnp.tanh(c * (x + 0.044715 * x * x * x)))


def topk_binarizer(scores, threshold):
    # TopKBinarizer.forward: top int(threshold * n) entries -> 1.0, rest -> 0.0.
    # Tiny (num_heads elements) -> plain JAX, not a kernel.
    j = int(threshold * scores.shape[0])
    order = jnp.argsort(-scores)
    mask = jnp.zeros_like(scores)
    if j > 0:
        mask = mask.at[order[:j]].set(1.0)
    return mask


def _full_spec(a):
    # Whole-array block, same block every grid step (stays VMEM-resident).
    return pl.BlockSpec(a.shape, lambda i, _nd=a.ndim: (0,) * _nd)


def _pick_tile(rows, block_rows):
    # Largest sublane-aligned tile <= block_rows that divides rows exactly
    # (keeps the 1-D token grids exact, no tail masking).  Falls back to a
    # single full-extent block, which is always a legal BlockSpec.
    if rows <= block_rows:
        return rows
    for t in range(block_rows, 7, -8):
        if rows % t == 0:
            return t
    return rows


# 48 MiB scoped VMEM for the token-tiled matmul kernels: well above v5e's 16 MiB
# default (resident bf16 FFN weights + double-buffered 512-row tiles) while
# leaving headroom under v7x's 64 MiB physical VMEM.
_TOKEN_TILED_PARAMS = pltpu.CompilerParams(
    dimension_semantics=("parallel",),
    vmem_limit_bytes=48 * 1024 * 1024,
)


# ----------------------------------------------------------------------------
# Kernel 1: gate routing + single-pass Q/K/V projection for both MoE branches.
# ----------------------------------------------------------------------------
def _route_qkv_kernel(x_ref, wg_ref, bg_ref,
                      wq_ref, bq_ref, wk_ref, bk_ref, wv_ref, bv_ref,
                      q0_ref, k0_ref, v0_ref, q1_ref, k1_ref, v1_ref):
    x = x_ref[...]                                     # (T, H), compute dtype
    # gate_head (weight lane-padded to 128 cols in the wrapper; cols 0/1 real).
    gate = jnp.dot(x, wg_ref[...],
                   preferred_element_type=jnp.float32) + bg_ref[...]
    sel1 = gate[:, 1:2] > gate[:, 0:1]                 # argmax==1 (ties -> expert 0)

    def project(w_ref, b_ref, o0_ref, o1_ref):
        # Row masking commutes with the projection: project once (bf16 MXU,
        # f32 accumulate), then mask the f32 output per branch (VPU selects).
        z = jnp.dot(x, w_ref[...], preferred_element_type=jnp.float32)
        b = b_ref[...]                                 # f32 (1, N)
        o0_ref[...] = (jnp.where(sel1, 0.0, z) + b).astype(o0_ref.dtype)
        o1_ref[...] = (jnp.where(sel1, z, 0.0) + b).astype(o1_ref.dtype)

    project(wq_ref, bq_ref, q0_ref, q1_ref)
    project(wk_ref, bk_ref, k0_ref, k1_ref)
    project(wv_ref, bv_ref, v0_ref, v1_ref)


def _route_and_project(x_flat, wg, bg, wq, bq, wk, bk, wv, bv, *, block_rows):
    rows, H = x_flat.shape
    T = _pick_tile(rows, block_rows)

    # Lane-pad the 2-way gate to a full 128-lane slab (dense MXU/VPU work).
    GP = 128
    wg_pad = jnp.zeros((H, GP), wg.dtype).at[:, : wg.shape[1]].set(wg)
    bg_pad = jnp.zeros((1, GP), jnp.float32).at[:, : bg.shape[1]].set(bg)

    row_spec = pl.BlockSpec((T, H), lambda i: (i, 0))
    sds = jax.ShapeDtypeStruct((rows, H), x_flat.dtype)

    return pl.pallas_call(
        _route_qkv_kernel,
        out_shape=(sds,) * 6,
        grid_spec=pltpu.PrefetchScalarGridSpec(
            num_scalar_prefetch=0,
            grid=(rows // T,),
            in_specs=[row_spec,
                      _full_spec(wg_pad), _full_spec(bg_pad),
                      _full_spec(wq), _full_spec(bq),
                      _full_spec(wk), _full_spec(bk),
                      _full_spec(wv), _full_spec(bv)],
            out_specs=[row_spec] * 6),
        compiler_params=_TOKEN_TILED_PARAMS,
    )(x_flat, wg_pad, bg_pad, wq, bq, wk, bk, wv, bv)


# ----------------------------------------------------------------------------
# Kernel 2: MoE self-attention core, grid over (batch, head-group).
# ----------------------------------------------------------------------------
def _moe_attention_kernel(hm1_ref, hm2_ref,            # scalar-prefetch (SMEM), (nH,) int32
                          q0_ref, k0_ref, v0_ref, q1_ref, k1_ref, v1_ref,
                          mask_ref, o_ref, *, head_dim, heads_per_block, sm_scale):
    grp = pl.program_id(1)
    addm = mask_ref[0, 0]                              # (1, S) additive mask, f32
    S = q0_ref.shape[1]
    d = head_dim

    def softmax_probs(q, k):                           # q pre-scaled by sm_scale
        s = lax.dot_general(q, k, (((1,), (1,)), ((), ())),
                            preferred_element_type=jnp.float32)
        s = s + addm
        m = jnp.max(s, axis=-1, keepdims=True)
        e = jnp.exp(s - m)
        return e * pl.reciprocal(jnp.sum(e, axis=-1, keepdims=True), approx=True)

    for local in range(heads_per_block):               # static unroll over the group
        c0, c1 = local * d, (local + 1) * d
        h = grp * heads_per_block + local
        hm1 = hm1_ref[h]                               # head_mask_1[h] in {0,1}
        hm2 = hm2_ref[h]                               # head_mask_2[h] in {0,1}

        q0h = q0_ref[0, :, c0:c1] * sm_scale
        k0h = k0_ref[0, :, c0:c1]
        q1h = q1_ref[0, :, c0:c1] * sm_scale
        k1h = k1_ref[0, :, c0:c1]
        v0h = v0_ref[0, :, c0:c1]
        v1h = v1_ref[0, :, c0:c1]

        # Reference (cumulative-probs) per-head context:
        #   ctx = hm1 * p0 @ (V0 + V1) + hm2 * p1 @ V1
        # Branch-skip: a branch's QK^T + softmax + PV is elided when its mask is 0.
        def ctx0_fn():
            p = softmax_probs(q0h, k0h)
            v01 = v0h + v1h
            return jnp.dot(p.astype(v01.dtype), v01,
                           preferred_element_type=jnp.float32)

        def ctx1_fn():
            p = softmax_probs(q1h, k1h)
            return jnp.dot(p.astype(v1h.dtype), v1h,
                           preferred_element_type=jnp.float32)

        def zero_fn():
            return jnp.zeros((S, d), jnp.float32)

        # TODO(synk): attention-probs dropout is identity (eval mode).
        ctx = lax.cond(hm1 > 0, ctx0_fn, zero_fn) + lax.cond(hm2 > 0, ctx1_fn, zero_fn)
        o_ref[0, :, c0:c1] = ctx.astype(o_ref.dtype)


def _moe_attention(q0, k0, v0, q1, k1, v1, ext_mask, hm1_i, hm2_i, *,
                   num_heads, sm_scale):
    B, S, H = q0.shape
    d = H // num_heads
    # Heads per grid step: smallest divisor of num_heads giving a 128-lane-dense
    # block along the hidden axis; otherwise all heads (full-extent last dim).
    hpb = num_heads
    for c in range(1, num_heads + 1):
        if num_heads % c == 0 and (c * d) % 128 == 0:
            hpb = c
            break
    n_groups = num_heads // hpb

    qkv_spec = pl.BlockSpec((1, S, hpb * d), lambda b, g, hm1, hm2: (b, 0, g))
    mask_spec = pl.BlockSpec((1, 1, 1, S), lambda b, g, hm1, hm2: (b, 0, 0, 0))

    return pl.pallas_call(
        functools.partial(_moe_attention_kernel, head_dim=d,
                          heads_per_block=hpb, sm_scale=sm_scale),
        out_shape=jax.ShapeDtypeStruct((B, S, H), q0.dtype),
        grid_spec=pltpu.PrefetchScalarGridSpec(
            num_scalar_prefetch=2,
            grid=(B, n_groups),
            in_specs=[qkv_spec] * 6 + [mask_spec],
            out_specs=qkv_spec),
        compiler_params=pltpu.CompilerParams(
            dimension_semantics=("parallel", "parallel")),
    )(hm1_i, hm2_i, q0, k0, v0, q1, k1, v1, ext_mask)


# ----------------------------------------------------------------------------
# Kernel 3: dense + bias + residual + LayerNorm (BertSelfOutput / BertOutput).
# ----------------------------------------------------------------------------
def _linear_residual_ln_kernel(x_ref, w_ref, b_ref, res_ref, g_ref, be_ref, o_ref, *, eps):
    y = jnp.dot(x_ref[...], w_ref[...], preferred_element_type=jnp.float32)
    # TODO(synk): hidden-state dropout is identity (eval mode).
    y = y + b_ref[...] + res_ref[...].astype(jnp.float32)
    mean = jnp.mean(y, axis=-1, keepdims=True)
    yc = y - mean
    var = jnp.mean(yc * yc, axis=-1, keepdims=True)
    y = yc * lax.rsqrt(var + eps)
    y = y * g_ref[...] + be_ref[...]
    o_ref[...] = y.astype(o_ref.dtype)


def _linear_residual_ln(x, w, b, res, gamma, beta, *, eps, block_rows):
    rows, K = x.shape
    N = w.shape[1]
    T = _pick_tile(rows, block_rows)
    return pl.pallas_call(
        functools.partial(_linear_residual_ln_kernel, eps=eps),
        out_shape=jax.ShapeDtypeStruct((rows, N), x.dtype),
        grid_spec=pltpu.PrefetchScalarGridSpec(
            num_scalar_prefetch=0,
            grid=(rows // T,),
            in_specs=[pl.BlockSpec((T, K), lambda i: (i, 0)),
                      _full_spec(w), _full_spec(b),
                      pl.BlockSpec((T, N), lambda i: (i, 0)),
                      _full_spec(gamma), _full_spec(beta)],
            out_specs=pl.BlockSpec((T, N), lambda i: (i, 0))),
        compiler_params=_TOKEN_TILED_PARAMS,
    )(x, w, b, res, gamma, beta)


# ----------------------------------------------------------------------------
# Kernel 4: dense + bias + GELU (BertIntermediate).
# ----------------------------------------------------------------------------
def _linear_gelu_kernel(x_ref, w_ref, b_ref, o_ref):
    y = jnp.dot(x_ref[...], w_ref[...],
                preferred_element_type=jnp.float32) + b_ref[...]
    o_ref[...] = _gelu(y).astype(o_ref.dtype)


def _linear_gelu(x, w, b, *, block_rows):
    rows, K = x.shape
    N = w.shape[1]
    T = _pick_tile(rows, block_rows)
    return pl.pallas_call(
        _linear_gelu_kernel,
        out_shape=jax.ShapeDtypeStruct((rows, N), x.dtype),
        grid_spec=pltpu.PrefetchScalarGridSpec(
            num_scalar_prefetch=0,
            grid=(rows // T,),
            in_specs=[pl.BlockSpec((T, K), lambda i: (i, 0)),
                      _full_spec(w), _full_spec(b)],
            out_specs=pl.BlockSpec((T, N), lambda i: (i, 0))),
        compiler_params=_TOKEN_TILED_PARAMS,
    )(x, w, b)


# ----------------------------------------------------------------------------
# BertLayer forward (Pallas path).
# ----------------------------------------------------------------------------
def pallas_bert_layer(hidden_states, ext_attention_mask, params, *,
                      threshold, eps, num_heads,
                      compute_dtype=jnp.bfloat16, block_rows=512):
    """BertLayer forward (eval mode).  Matmuls use `compute_dtype` operands
    (bf16 default) with f32 accumulation; epilogues (softmax/LN/GELU) in f32."""
    B, S, H = hidden_states.shape
    d = H // num_heads
    cd = compute_dtype
    f32 = jnp.float32

    # TopKBinarizer head masks (binary 0/1) -> int32 for SMEM scalar prefetch.
    hm1_i = topk_binarizer(params["hm_scores_1"], threshold).astype(jnp.int32)
    hm2_i = topk_binarizer(params["hm_scores_2"], threshold).astype(jnp.int32)

    x_flat = hidden_states.reshape(B * S, H).astype(cd)
    wg = params["wg"].astype(cd)
    wq, wk, wv = params["wq"].astype(cd), params["wk"].astype(cd), params["wv"].astype(cd)
    wo, wi, wo2 = params["wo"].astype(cd), params["wi"].astype(cd), params["wo2"].astype(cd)

    # 1) gate routing + one-pass Q/K/V projection for both branches.
    q0, k0, v0, q1, k1, v1 = _route_and_project(
        x_flat, wg, params["bg"].astype(f32),
        wq, params["bq"].astype(f32), wk, params["bk"].astype(f32),
        wv, params["bv"].astype(f32), block_rows=block_rows)

    # 2) MoE attention directly on the (B, S, H) layout (head split handled by
    #    BlockSpec column blocks + in-kernel slices; no transpose round trips).
    def as_bsh(t):
        return t.reshape(B, S, H)        # free reshape (splits the leading dim)

    ctx = _moe_attention(as_bsh(q0), as_bsh(k0), as_bsh(v0),
                         as_bsh(q1), as_bsh(k1), as_bsh(v1),
                         ext_attention_mask.astype(f32), hm1_i, hm2_i,
                         num_heads=num_heads, sm_scale=1.0 / math.sqrt(d))
    ctx_flat = ctx.reshape(B * S, H)

    # 3) BertSelfOutput: dense + residual(hidden_states) + LayerNorm.
    attn_out = _linear_residual_ln(
        ctx_flat, wo, params["bo"].astype(f32), x_flat,
        params["ln1_g"].astype(f32), params["ln1_b"].astype(f32),
        eps=eps, block_rows=block_rows)
    # 4) BertIntermediate: dense + GELU.
    inter = _linear_gelu(attn_out, wi, params["bi"].astype(f32),
                         block_rows=block_rows)
    # 5) BertOutput: dense + residual(attention_output) + LayerNorm.
    layer_out = _linear_residual_ln(
        inter, wo2, params["bo2"].astype(f32), attn_out,
        params["ln2_g"].astype(f32), params["ln2_b"].astype(f32),
        eps=eps, block_rows=block_rows)
    return layer_out.reshape(B, S, H)


# ----------------------------------------------------------------------------
# Pure-JAX reference (faithful port of the PyTorch forward, eval mode, f32).
# ----------------------------------------------------------------------------
def _reference_bert_layer(hidden, ext_mask, params, *, threshold, eps, num_heads):
    B, S, H = hidden.shape
    d = H // num_heads
    hm1 = topk_binarizer(params["hm_scores_1"], threshold)
    hm2 = topk_binarizer(params["hm_scores_2"], threshold)

    gate = hidden @ params["wg"] + params["bg"]
    sel = jnp.argmax(gate, axis=-1)                                  # (B, S)

    def heads(t):
        return t.reshape(B, S, num_heads, d).transpose(0, 2, 1, 3)

    final_ctx = jnp.zeros_like(hidden)
    final_probs = jnp.zeros((B, num_heads, S, S), jnp.float32)
    for m_idx, hm in enumerate([hm1, hm2]):
        x_m = jnp.where((sel == m_idx)[..., None], hidden, 0.0)
        q = heads(x_m @ params["wq"] + params["bq"])
        k = heads(x_m @ params["wk"] + params["bk"])
        v = heads(x_m @ params["wv"] + params["bv"])
        s = jnp.einsum("bhqd,bhkd->bhqk", q, k) / math.sqrt(d) + ext_mask
        s_max = jnp.max(s, axis=-1, keepdims=True)
        e = jnp.exp(s - s_max)
        p = e / jnp.sum(e, axis=-1, keepdims=True)
        final_probs = final_probs + p * hm[None, :, None, None]
        ctx = jnp.einsum("bhqk,bhkd->bhqd", final_probs, v)
        final_ctx = final_ctx + ctx.transpose(0, 2, 1, 3).reshape(B, S, H)

    def ln(x, g, b):
        mu = jnp.mean(x, axis=-1, keepdims=True)
        xc = x - mu
        var = jnp.mean(xc * xc, axis=-1, keepdims=True)
        return xc * lax.rsqrt(var + eps) * g + b

    attn_out = ln(final_ctx @ params["wo"] + params["bo"] + hidden,
                  params["ln1_g"], params["ln1_b"])
    inter = _gelu(attn_out @ params["wi"] + params["bi"])
    layer_out = ln(inter @ params["wo2"] + params["bo2"] + attn_out,
                   params["ln2_g"], params["ln2_b"])
    return layer_out


# ----------------------------------------------------------------------------
# Demo / self-check
# ----------------------------------------------------------------------------
if __name__ == "__main__":
    B, S, H, nH, I = 2, 8, 32, 4, 64
    threshold = 0.5
    eps = 1e-12
    scale = 0.1

    key = jax.random.PRNGKey(0)
    ks = jax.random.split(key, 20)

    params = {
        "hm_scores_1": jax.random.normal(ks[0], (nH,), jnp.float32),
        "hm_scores_2": jax.random.normal(ks[1], (nH,), jnp.float32),
        "wg": scale * jax.random.normal(ks[2], (H, 2), jnp.float32),
        "bg": scale * jax.random.normal(ks[3], (1, 2), jnp.float32),
        "wq": scale * jax.random.normal(ks[4], (H, H), jnp.float32),
        "bq": scale * jax.random.normal(ks[5], (1, H), jnp.float32),
        "wk": scale * jax.random.normal(ks[6], (H, H), jnp.float32),
        "bk": scale * jax.random.normal(ks[7], (1, H), jnp.float32),
        "wv": scale * jax.random.normal(ks[8], (H, H), jnp.float32),
        "bv": scale * jax.random.normal(ks[9], (1, H), jnp.float32),
        "wo": scale * jax.random.normal(ks[10], (H, H), jnp.float32),
        "bo": scale * jax.random.normal(ks[11], (1, H), jnp.float32),
        "ln1_g": 1.0 + 0.1 * jax.random.normal(ks[12], (1, H), jnp.float32),
        "ln1_b": 0.1 * jax.random.normal(ks[13], (1, H), jnp.float32),
        "wi": scale * jax.random.normal(ks[14], (H, I), jnp.float32),
        "bi": scale * jax.random.normal(ks[15], (1, I), jnp.float32),
        "wo2": scale * jax.random.normal(ks[16], (I, H), jnp.float32),
        "bo2": scale * jax.random.normal(ks[17], (1, H), jnp.float32),
        "ln2_g": 1.0 + 0.1 * jax.random.normal(ks[18], (1, H), jnp.float32),
        "ln2_b": 0.1 * jax.random.normal(ks[19], (1, H), jnp.float32),
    }

    hidden = jax.random.normal(jax.random.PRNGKey(42), (B, S, H), jnp.float32)
    # HF-style additive extended attention mask (pad out last 2 tokens of batch 1).
    attn = jnp.ones((B, S), jnp.float32).at[1, S - 2:].set(0.0)
    ext_mask = (1.0 - attn)[:, None, None, :] * -10000.0          # (B, 1, 1, S)

    out = pallas_bert_layer(hidden, ext_mask, params,
                            threshold=threshold, eps=eps, num_heads=nH,
                            compute_dtype=jnp.bfloat16)
    out = jax.block_until_ready(out)

    # Reference in f32 on the same bf16-rounded activations/weight matrices the
    # kernel path uses, so the check isolates kernel-structure correctness.
    def bf16_round(a):
        return a.astype(jnp.bfloat16).astype(jnp.float32)

    w_keys = ("wg", "wq", "wk", "wv", "wo", "wi", "wo2")
    params_ref = {k: (bf16_round(v) if k in w_keys else v) for k, v in params.items()}
    ref = _reference_bert_layer(bf16_round(hidden), ext_mask, params_ref,
                                threshold=threshold, eps=eps, num_heads=nH)

    out_f = out.astype(jnp.float32)
    err = float(jnp.max(jnp.abs(out_f - ref)))
    assert out.shape == (B, S, H)
    assert jnp.allclose(out_f, ref, atol=3e-2, rtol=3e-2), ("max abs err", err)

    print("KERNEL_OK")
</pallas_src>

<mosaic_0001>
module attributes {stable_mosaic.version = 11 : i64} {
  func.func @_route_qkv_kernel(%arg0: i32, %arg1: memref<16x32xbf16, #tpu.memory_space<vmem>>, %arg2: memref<32x128xbf16, #tpu.memory_space<vmem>>, %arg3: memref<1x128xf32, #tpu.memory_space<vmem>>, %arg4: memref<32x32xbf16, #tpu.memory_space<vmem>>, %arg5: memref<1x32xf32, #tpu.memory_space<vmem>>, %arg6: memref<32x32xbf16, #tpu.memory_space<vmem>>, %arg7: memref<1x32xf32, #tpu.memory_space<vmem>>, %arg8: memref<32x32xbf16, #tpu.memory_space<vmem>>, %arg9: memref<1x32xf32, #tpu.memory_space<vmem>>, %arg10: memref<16x32xbf16, #tpu.memory_space<vmem>>, %arg11: memref<16x32xbf16, #tpu.memory_space<vmem>>, %arg12: memref<16x32xbf16, #tpu.memory_space<vmem>>, %arg13: memref<16x32xbf16, #tpu.memory_space<vmem>>, %arg14: memref<16x32xbf16, #tpu.memory_space<vmem>>, %arg15: memref<16x32xbf16, #tpu.memory_space<vmem>>) attributes {dimension_semantics = [#tpu.dimension_semantics<parallel>], iteration_bounds = array<i64: 1>, scalar_prefetch = 0 : i64, scratch_operands = 0 : i64, tpu.core_type = #tpu.core_type<tc>, window_params = [{transform_indices = @transform_0, window_bounds = array<i64: 16, 32>}, {pipeline_mode = #tpu.pipeline_mode<synchronous>, transform_indices = @transform_1, window_bounds = array<i64: 32, 128>}, {pipeline_mode = #tpu.pipeline_mode<synchronous>, transform_indices = @transform_2, window_bounds = array<i64: 1, 128>}, {pipeline_mode = #tpu.pipeline_mode<synchronous>, transform_indices = @transform_3, window_bounds = array<i64: 32, 32>}, {pipeline_mode = #tpu.pipeline_mode<synchronous>, transform_indices = @transform_4, window_bounds = array<i64: 1, 32>}, {pipeline_mode = #tpu.pipeline_mode<synchronous>, transform_indices = @transform_5, window_bounds = array<i64: 32, 32>}, {pipeline_mode = #tpu.pipeline_mode<synchronous>, transform_indices = @transform_6, window_bounds = array<i64: 1, 32>}, {pipeline_mode = #tpu.pipeline_mode<synchronous>, transform_indices = @transform_7, window_bounds = array<i64: 32, 32>}, {pipeline_mode = #tpu.pipeline_mode<synchronous>, transform_indices = @transform_8, window_bounds = array<i64: 1, 32>}, {transform_indices = @transform_9, window_bounds = array<i64: 16, 32>}, {transform_indices = @transform_10, window_bounds = array<i64: 16, 32>}, {transform_indices = @transform_11, window_bounds = array<i64: 16, 32>}, {transform_indices = @transform_12, window_bounds = array<i64: 16, 32>}, {transform_indices = @transform_13, window_bounds = array<i64: 16, 32>}, {transform_indices = @transform_14, window_bounds = array<i64: 16, 32>}]} {
    %c0 = arith.constant 0 : index
    %c0_0 = arith.constant 0 : index
    %0 = vector.load %arg1[%c0, %c0_0] : memref<16x32xbf16, #tpu.memory_space<vmem>>, vector<16x32xbf16>
    %c0_1 = arith.constant 0 : index
    %c0_2 = arith.constant 0 : index
    %1 = vector.load %arg2[%c0_1, %c0_2] : memref<32x128xbf16, #tpu.memory_space<vmem>>, vector<32x128xbf16>
    %cst = arith.constant dense<0.000000e+00> : vector<16x128xf32>
    %2 = tpu.matmul %0, %1, %cst {dimension_numbers = #tpu.dot_dimension_numbers<[1], [0], [0], [1], [0, 0, 1, 1], [], []>} : vector<16x32xbf16>, vector<32x128xbf16>, vector<16x128xf32> -> vector<16x128xf32>
    %c0_3 = arith.constant 0 : index
    %c0_4 = arith.constant 0 : index
    %3 = vector.load %arg3[%c0_3, %c0_4] : memref<1x128xf32, #tpu.memory_space<vmem>>, vector<1x128xf32>
    %4 = vector.broadcast %3 : vector<1x128xf32> to vector<16x128xf32>
    %5 = arith.addf %2, %4 : vector<16x128xf32>
    %6 = vector.extract_strided_slice %5 {offsets = [0, 1], sizes = [16, 1], strides = [1, 1]} : vector<16x128xf32> to vector<16x1xf32>
    %7 = vector.extract_strided_slice %5 {offsets = [0, 0], sizes = [16, 1], strides = [1, 1]} : vector<16x128xf32> to vector<16x1xf32>
    %8 = arith.cmpf ogt, %6, %7 : vector<16x1xf32>
    %c0_5 = arith.constant 0 : index
    %c0_6 = arith.constant 0 : index
    %9 = vector.load %arg4[%c0_5, %c0_6] : memref<32x32xbf16, #tpu.memory_space<vmem>>, vector<32x32xbf16>
    %cst_7 = arith.constant dense<0.000000e+00> : vector<16x32xf32>
    %10 = tpu.matmul %0, %9, %cst_7 {dimension_numbers = #tpu.dot_dimension_numbers<[1], [0], [0], [1], [0, 0, 1, 1], [], []>} : vector<16x32xbf16>, vector<32x32xbf16>, vector<16x32xf32> -> vector<16x32xf32>
    %c0_8 = arith.constant 0 : index
    %c0_9 = arith.constant 0 : index
    %11 = vector.load %arg5[%c0_8, %c0_9] : memref<1x32xf32, #tpu.memory_space<vmem>>, vector<1x32xf32>
    %cst_10 = arith.constant 0.000000e+00 : f32
    %12 = vector.shape_cast %8 : vector<16x1xi1> to vector<16x1xi1>
    %13 = vector.broadcast %12 : vector<16x1xi1> to vector<16x32xi1>
    %14 = vector.broadcast %cst_10 : f32 to vector<16x32xf32>
    %15 = arith.select %13, %14, %10 : vector<16x32xi1>, vector<16x32xf32>
    %16 = vector.broadcast %11 : vector<1x32xf32> to vector<16x32xf32>
    %17 = arith.addf %15, %16 : vector<16x32xf32>
    %18 = arith.truncf %17 : vector<16x32xf32> to vector<16x32xbf16>
    %c0_11 = arith.constant 0 : index
    %c0_12 = arith.constant 0 : index
    %19 = vector.load %arg10[%c0_11, %c0_12] : memref<16x32xbf16, #tpu.memory_space<vmem>>, vector<16x32xbf16>
    tpu.vector_store %arg10[%c0_11, %c0_12], %18 {strides = array<i32>} : memref<16x32xbf16, #tpu.memory_space<vmem>>, vector<16x32xbf16>,
    %cst_13 = arith.constant 0.000000e+00 : f32
    %20 = vector.shape_cast %8 : vector<16x1xi1> to vector<16x1xi1>
    %21 = vector.broadcast %20 : vector<16x1xi1> to vector<16x32xi1>
    %22 = vector.broadcast %cst_13 : f32 to vector<16x32xf32>
    %23 = arith.select %21, %10, %22 : vector<16x32xi1>, vector<16x32xf32>
    %24 = vector.broadcast %11 : vector<1x32xf32> to vector<16x32xf32>
    %25 = arith.addf %23, %24 : vector<16x32xf32>
    %26 = arith.truncf %25 : vector<16x32xf32> to vector<16x32xbf16>
    %c0_14 = arith.constant 0 : index
    %c0_15 = arith.constant 0 : index
    %27 = vector.load %arg13[%c0_14, %c0_15] : memref<16x32xbf16, #tpu.memory_space<vmem>>, vector<16x32xbf16>
    tpu.vector_store %arg13[%c0_14, %c0_15], %26 {strides = array<i32>} : memref<16x32xbf16, #tpu.memory_space<vmem>>, vector<16x32xbf16>,
    %c0_16 = arith.constant 0 : index
    %c0_17 = arith.constant 0 : index
    %28 = vector.load %arg6[%c0_16, %c0_17] : memref<32x32xbf16, #tpu.memory_space<vmem>>, vector<32x32xbf16>
    %cst_18 = arith.constant dense<0.000000e+00> : vector<16x32xf32>
    %29 = tpu.matmul %0, %28, %cst_18 {dimension_numbers = #tpu.dot_dimension_numbers<[1], [0], [0], [1], [0, 0, 1, 1], [], []>} : vector<16x32xbf16>, vector<32x32xbf16>, vector<16x32xf32> -> vector<16x32xf32>
    %c0_19 = arith.constant 0 : index
    %c0_20 = arith.constant 0 : index
    %30 = vector.load %arg7[%c0_19, %c0_20] : memref<1x32xf32, #tpu.memory_space<vmem>>, vector<1x32xf32>
    %cst_21 = arith.constant 0.000000e+00 : f32
    %31 = vector.shape_cast %8 : vector<16x1xi1> to vector<16x1xi1>
    %32 = vector.broadcast %31 : vector<16x1xi1> to vector<16x32xi1>
    %33 = vector.broadcast %cst_21 : f32 to vector<16x32xf32>
    %34 = arith.select %32, %33, %29 : vector<16x32xi1>, vector<16x32xf32>
    %35 = vector.broadcast %30 : vector<1x32xf32> to vector<16x32xf32>
    %36 = arith.addf %34, %35 : vector<16x32xf32>
    %37 = arith.truncf %36 : vector<16x32xf32> to vector<16x32xbf16>
    %c0_22 = arith.constant 0 : index
    %c0_23 = arith.constant 0 : index
    %38 = vector.load %arg11[%c0_22, %c0_23] : memref<16x32xbf16, #tpu.memory_space<vmem>>, vector<16x32xbf16>
    tpu.vector_store %arg11[%c0_22, %c0_23], %37 {strides = array<i32>} : memref<16x32xbf16, #tpu.memory_space<vmem>>, vector<16x32xbf16>,
    %cst_24 = arith.constant 0.000000e+00 : f32
    %39 = vector.shape_cast %8 : vector<16x1xi1> to vector<16x1xi1>
    %40 = vector.broadcast %39 : vector<16x1xi1> to vector<16x32xi1>
    %41 = vector.broadcast %cst_24 : f32 to vector<16x32xf32>
    %42 = arith.select %40, %29, %41 : vector<16x32xi1>, vector<16x32xf32>
    %43 = vector.broadcast %30 : vector<1x32xf32> to vector<16x32xf32>
    %44 = arith.addf %42, %43 : vector<16x32xf32>
    %45 = arith.truncf %44 : vector<16x32xf32> to vector<16x32xbf16>
    %c0_25 = arith.constant 0 : index
    %c0_26 = arith.constant 0 : index
    %46 = vector.load %arg14[%c0_25, %c0_26] : memref<16x32xbf16, #tpu.memory_space<vmem>>, vector<16x32xbf16>
    tpu.vector_store %arg14[%c0_25, %c0_26], %45 {strides = array<i32>} : memref<16x32xbf16, #tpu.memory_space<vmem>>, vector<16x32xbf16>,
    %c0_27 = arith.constant 0 : index
    %c0_28 = arith.constant 0 : index
    %47 = vector.load %arg8[%c0_27, %c0_28] : memref<32x32xbf16, #tpu.memory_space<vmem>>, vector<32x32xbf16>
    %cst_29 = arith.constant dense<0.000000e+00> : vector<16x32xf32>
    %48 = tpu.matmul %0, %47, %cst_29 {dimension_numbers = #tpu.dot_dimension_numbers<[1], [0], [0], [1], [0, 0, 1, 1], [], []>} : vector<16x32xbf16>, vector<32x32xbf16>, vector<16x32xf32> -> vector<16x32xf32>
    %c0_30 = arith.constant 0 : index
    %c0_31 = arith.constant 0 : index
    %49 = vector.load %arg9[%c0_30, %c0_31] : memref<1x32xf32, #tpu.memory_space<vmem>>, vector<1x32xf32>
    %cst_32 = arith.constant 0.000000e+00 : f32
    %50 = vector.shape_cast %8 : vector<16x1xi1> to vector<16x1xi1>
    %51 = vector.broadcast %50 : vector<16x1xi1> to vector<16x32xi1>
    %52 = vector.broadcast %cst_32 : f32 to vector<16x32xf32>
    %53 = arith.select %51, %52, %48 : vector<16x32xi1>, vector<16x32xf32>
    %54 = vector.broadcast %49 : vector<1x32xf32> to vector<16x32xf32>
    %55 = arith.addf %53, %54 : vector<16x32xf32>
    %56 = arith.truncf %55 : vector<16x32xf32> to vector<16x32xbf16>
    %c0_33 = arith.constant 0 : index
    %c0_34 = arith.constant 0 : index
    %57 = vector.load %arg12[%c0_33, %c0_34] : memref<16x32xbf16, #tpu.memory_space<vmem>>, vector<16x32xbf16>
    tpu.vector_store %arg12[%c0_33, %c0_34], %56 {strides = array<i32>} : memref<16x32xbf16, #tpu.memory_space<vmem>>, vector<16x32xbf16>,
    %cst_35 = arith.constant 0.000000e+00 : f32
    %58 = vector.shape_cast %8 : vector<16x1xi1> to vector<16x1xi1>
    %59 = vector.broadcast %58 : vector<16x1xi1> to vector<16x32xi1>
    %60 = vector.broadcast %cst_35 : f32 to vector<16x32xf32>
    %61 = arith.select %59, %48, %60 : vector<16x32xi1>, vector<16x32xf32>
    %62 = vector.broadcast %49 : vector<1x32xf32> to vector<16x32xf32>
    %63 = arith.addf %61, %62 : vector<16x32xf32>
    %64 = arith.truncf %63 : vector<16x32xf32> to vector<16x32xbf16>
    %c0_36 = arith.constant 0 : index
    %c0_37 = arith.constant 0 : index
    %65 = vector.load %arg15[%c0_36, %c0_37] : memref<16x32xbf16, #tpu.memory_space<vmem>>, vector<16x32xbf16>
    tpu.vector_store %arg15[%c0_36, %c0_37], %64 {strides = array<i32>} : memref<16x32xbf16, #tpu.memory_space<vmem>>, vector<16x32xbf16>,
    return
  }
  func.func @transform_0(%arg0: i32) -> (i32, i32) {
    %c0_i32 = arith.constant 0 : i32
    %c0_i32_0 = arith.constant 0 : i32
    return %arg0, %c0_i32 : i32, i32
  }
  func.func @transform_1(%arg0: i32) -> (i32, i32) {
    %c0_i32 = arith.constant 0 : i32
    %c0_i32_0 = arith.constant 0 : i32
    %c0_i32_1 = arith.constant 0 : i32
    return %c0_i32, %c0_i32_0 : i32, i32
  }
  func.func @transform_2(%arg0: i32) -> (i32, i32) {
    %c0_i32 = arith.constant 0 : i32
    %c0_i32_0 = arith.constant 0 : i32
    %c0_i32_1 = arith.constant 0 : i32
    return %c0_i32, %c0_i32_0 : i32, i32
  }
  func.func @transform_3(%arg0: i32) -> (i32, i32) {
    %c0_i32 = arith.constant 0 : i32
    %c0_i32_0 = arith.constant 0 : i32
    %c0_i32_1 = arith.constant 0 : i32
    return %c0_i32, %c0_i32_0 : i32, i32
  }
  func.func @transform_4(%arg0: i32) -> (i32, i32) {
    %c0_i32 = arith.constant 0 : i32
    %c0_i32_0 = arith.constant 0 : i32
    %c0_i32_1 = arith.constant 0 : i32
    return %c0_i32, %c0_i32_0 : i32, i32
  }
  func.func @transform_5(%arg0: i32) -> (i32, i32) {
    %c0_i32 = arith.constant 0 : i32
    %c0_i32_0 = arith.constant 0 : i32
    %c0_i32_1 = arith.constant 0 : i32
    return %c0_i32, %c0_i32_0 : i32, i32
  }
  func.func @transform_6(%arg0: i32) -> (i32, i32) {
    %c0_i32 = arith.constant 0 : i32
    %c0_i32_0 = arith.constant 0 : i32
    %c0_i32_1 = arith.constant 0 : i32
    return %c0_i32, %c0_i32_0 : i32, i32
  }
  func.func @transform_7(%arg0: i32) -> (i32, i32) {
    %c0_i32 = arith.constant 0 : i32
    %c0_i32_0 = arith.constant 0 : i32
    %c0_i32_1 = arith.constant 0 : i32
    return %c0_i32, %c0_i32_0 : i32, i32
  }
  func.func @transform_8(%arg0: i32) -> (i32, i32) {
    %c0_i32 = arith.constant 0 : i32
    %c0_i32_0 = arith.constant 0 : i32
    %c0_i32_1 = arith.constant 0 : i32
    return %c0_i32, %c0_i32_0 : i32, i32
  }
  func.func @transform_9(%arg0: i32) -> (i32, i32) {
    %c0_i32 = arith.constant 0 : i32
    %c0_i32_0 = arith.constant 0 : i32
    return %arg0, %c0_i32 : i32, i32
  }
  func.func @transform_10(%arg0: i32) -> (i32, i32) {
    %c0_i32 = arith.constant 0 : i32
    %c0_i32_0 = arith.constant 0 : i32
    return %arg0, %c0_i32 : i32, i32
  }
  func.func @transform_11(%arg0: i32) -> (i32, i32) {
    %c0_i32 = arith.constant 0 : i32
    %c0_i32_0 = arith.constant 0 : i32
    return %arg0, %c0_i32 : i32, i32
  }
  func.func @transform_12(%arg0: i32) -> (i32, i32) {
    %c0_i32 = arith.constant 0 : i32
    %c0_i32_0 = arith.constant 0 : i32
    return %arg0, %c0_i32 : i32, i32
  }
  func.func @transform_13(%arg0: i32) -> (i32, i32) {
    %c0_i32 = arith.constant 0 : i32
    %c0_i32_0 = arith.constant 0 : i32
    return %arg0, %c0_i32 : i32, i32
  }
  func.func @transform_14(%arg0: i32) -> (i32, i32) {
    %c0_i32 = arith.constant 0 : i32
    %c0_i32_0 = arith.constant 0 : i32
    return %arg0, %c0_i32 : i32, i32
  }
}

</mosaic_0001>

<llo_original>
// kernel: tpu_custom_call.1
$region0: #{tpu_custom_call.1}
  #allocation0 [shape = 'u32[]', space=smem, size = 0x4, offset = 0x4, fixed_abs, tag = 'smem constant byte address 0x4 - core index']
  #allocation1 [shape = 'u32[144,128]{1,0:T(1,128)}', space=vmem, size = 0x12000, scoped, tag = 'internal scratch']
  %s0 = inlined_call_operand.hbm [shape: bf16[16,32], index: 0, kind: input, shape index: {}]
  %s1 = inlined_call_operand.hbm [shape: bf16[32,128], index: 1, kind: input, shape index: {}]
  %s2 = inlined_call_operand.vmem [shape: f32[1,128], index: 2, kind: input, shape index: {}]
  %s3 = inlined_call_operand.hbm [shape: bf16[32,32], index: 3, kind: input, shape index: {}]
  %s4 = inlined_call_operand.vmem [shape: f32[1,32], index: 4, kind: input, shape index: {}]
  %s5 = inlined_call_operand.vmem [shape: bf16[32,32], index: 5, kind: input, shape index: {}]
  %s6 = inlined_call_operand.vmem [shape: f32[1,32], index: 6, kind: input, shape index: {}]
  %s7 = inlined_call_operand.hbm [shape: bf16[32,32], index: 7, kind: input, shape index: {}]
  %s8 = inlined_call_operand.vmem [shape: f32[1,32], index: 8, kind: input, shape index: {}]
  %s9 = inlined_call_operand.hbm [shape: bf16[16,32], index: 9, kind: output, shape index: {0}]
  %s10 = inlined_call_operand.hbm [shape: bf16[16,32], index: 10, kind: output, shape index: {1}]
  %s11 = inlined_call_operand.hbm [shape: bf16[16,32], index: 11, kind: output, shape index: {2}]
  %s12 = inlined_call_operand.hbm [shape: bf16[16,32], index: 12, kind: output, shape index: {3}]
  %s13 = inlined_call_operand.hbm [shape: bf16[16,32], index: 13, kind: output, shape index: {4}]
  %s14 = inlined_call_operand.hbm [shape: bf16[16,32], index: 14, kind: output, shape index: {5}]
  %15 = xla_tuple %s9, %s10, %s11, %s12, %s13, %s14
  %s16 = sld [smem:[#allocation0]]
  $region102: #{tpu_custom_call.1} parent=0
    _
  %s18 = ssub.s32 1, %s16
  %s19 = scalar_select 0, %s18, %s16
  $region1: #{tpu_custom_call.1} parent=0
    #allocation2 [shape = 'u8[4096]{0}', space=vmem, size = 0x1000, scoped, tag = 'input window, operand 0, single buffered']
    #allocation3 [shape = 's32[1]{0}', space=sflag, size = 0x4, scoped, tag = 'scoped memory for tpu_custom_call.1']
    #allocation4 [shape = 's32[1]{0}', space=sflag, size = 0x4, scoped, tag = 'scoped memory for tpu_custom_call.1']
    #allocation5 [shape = 'u8[8192]{0}', space=vmem, size = 0x2000, scoped, tag = 'input window, operand 1, single buffered']
    #allocation6 [shape = 's32[1]{0}', space=sflag, size = 0x4, scoped, tag = 'scoped memory for tpu_custom_call.1']
    #allocation7 [shape = 'u8[8192]{0}', space=vmem, size = 0x2000, scoped, tag = 'input window, operand 3, single buffered']
    #allocation8 [shape = 'u8[8192]{0}', space=vmem, size = 0x2000, scoped, tag = 'input window, operand 7, single buffered']
    #allocation9 [shape = 's32[1]{0}', space=sflag, size = 0x4, scoped, tag = 'scoped memory for tpu_custom_call.1']
    #allocation10 [shape = 'u8[4096]{0}', space=vmem, size = 0x1000, scoped, tag = 'output window, operand 0, single buffered']
    #allocation11 [shape = 'u8[4096]{0}', space=vmem, size = 0x1000, scoped, tag = 'output window, operand 1, single buffered']
    #allocation12 [shape = 's32[1]{0}', space=sflag, size = 0x4, scoped, tag = 'scoped memory for tpu_custom_call.1']
    #allocation13 [shape = 'u8[4096]{0}', space=vmem, size = 0x1000, scoped, tag = 'output window, operand 2, single buffered']
    #allocation14 [shape = 'u8[4096]{0}', space=vmem, size = 0x1000, scoped, tag = 'output window, operand 3, single buffered']
    #allocation15 [shape = 's32[1]{0}', space=sflag, size = 0x4, scoped, tag = 'scoped memory for tpu_custom_call.1']
    #allocation16 [shape = 'u8[4096]{0}', space=vmem, size = 0x1000, scoped, tag = 'output window, operand 4, single buffered']
    #allocation17 [shape = 'u8[4096]{0}', space=vmem, size = 0x1000, scoped, tag = 'output window, operand 5, single buffered']
    #allocation18 [shape = 's32[1]{0}', space=sflag, size = 0x4, scoped, tag = 'scoped memory for tpu_custom_call.1']
    %20 = vsyncpa [#allocation3], 0
    %21 = vsyncpa [#allocation6], 0
    %22 = vsyncpa [#allocation9], 0
    %23 = vsyncpa [#allocation4], 0
    %24 = vsyncpa [#allocation12], 0
    %25 = vsyncpa [#allocation15], 0
    %26 = vsyncpa [#allocation18], 0
    // Predicated region
    $region2: #{tpu_custom_call.1} parent=1 // pred_check
      _
    $region3: #{tpu_custom_call.1} parent=1 // pred_check_branch
      %28 = sbr.rel (0) target = $region5
    $region4: #{tpu_custom_call.1} parent=1 // pred_region
      %s30 = ssub.s32 128, 128
      %31 = vsyncadd [#allocation3], %s30
      %s32 = sshll.u32 [#allocation2], 4
      %s33 = int_to_ptr.vmem [resolvable:$true] %s32
      %38 = dma.hbm_to_vmem [thread:$0]  %s0, 128, %s33, [#allocation3], 64, 64, 4
    $region5: #{tpu_custom_call.1} parent=1 // pred_fallthru
      _
    // Predicated region
    $region6: #{tpu_custom_call.1} parent=1 // pred_check
      _
    $region7: #{tpu_custom_call.1} parent=1 // pred_check_branch
      %40 = sbr.rel (0) target = $region9
    $region8: #{tpu_custom_call.1} parent=1 // pred_region
      %s42 = ssub.s32 256, 256
      %43 = vsyncadd [#allocation6], %s42
      %s44 = sshll.u32 [#allocation5], 4
      %s45 = int_to_ptr.vmem [resolvable:$true] %s44
      %50 = dma.hbm_to_vmem [thread:$0]  %s1, 256, %s45, [#allocation6], 64, 64, 4
    $region9: #{tpu_custom_call.1} parent=1 // pred_fallthru
      _
    // Predicated region
    $region10: #{tpu_custom_call.1} parent=1 // pred_check
      _
    $region11: #{tpu_custom_call.1} parent=1 // pred_check_branch
      %52 = sbr.rel (0) target = $region13
    $region12: #{tpu_custom_call.1} parent=1 // pred_region
      _
    $region13: #{tpu_custom_call.1} parent=1 // pred_fallthru
      _
    // Predicated region
    $region14: #{tpu_custom_call.1} parent=1 // pred_check
      _
    $region15: #{tpu_custom_call.1} parent=1 // pred_check_branch
      %54 = sbr.rel (0) target = $region17
    $region16: #{tpu_custom_call.1} parent=1 // pred_region
      %s56 = ssub.s32 256, 256
      %57 = vsyncadd [#allocation6], %s56
      %s58 = sshll.u32 [#allocation7], 4
      %s59 = int_to_ptr.vmem [resolvable:$true] %s58
      %64 = dma.hbm_to_vmem [thread:$0]  %s3, 256, %s59, [#allocation6], 64, 64, 4
    $region17: #{tpu_custom_call.1} parent=1 // pred_fallthru
      _
    // Predicated region
    $region18: #{tpu_custom_call.1} parent=1 // pred_check
      _
    $region19: #{tpu_custom_call.1} parent=1 // pred_check_branch
      %66 = sbr.rel (0) target = $region21
    $region20: #{tpu_custom_call.1} parent=1 // pred_region
      _
    $region21: #{tpu_custom_call.1} parent=1 // pred_fallthru
      _
    // Predicated region
    $region22: #{tpu_custom_call.1} parent=1 // pred_check
      _
    $region23: #{tpu_custom_call.1} parent=1 // pred_check_branch
      %68 = sbr.rel (0) target = $region25
    $region24: #{tpu_custom_call.1} parent=1 // pred_region
      _
    $region25: #{tpu_custom_call.1} parent=1 // pred_fallthru
      _
    // Predicated region
    $region26: #{tpu_custom_call.1} parent=1 // pred_check
      _
    $region27: #{tpu_custom_call.1} parent=1 // pred_check_branch
      %70 = sbr.rel (0) target = $region29
    $region28: #{tpu_custom_call.1} parent=1 // pred_region
      _
    $region29: #{tpu_custom_call.1} parent=1 // pred_fallthru
      _
    // Predicated region
    $region30: #{tpu_custom_call.1} parent=1 // pred_check
      _
    $region31: #{tpu_custom_call.1} parent=1 // pred_check_branch
      %72 = sbr.rel (0) target = $region33
    $region32: #{tpu_custom_call.1} parent=1 // pred_region
      %s74 = ssub.s32 256, 256
      %75 = vsyncadd [#allocation9], %s74
      %s76 = sshll.u32 [#allocation8], 4
      %s77 = int_to_ptr.vmem [resolvable:$true] %s76
      %82 = dma.hbm_to_vmem [thread:$0]  %s7, 256, %s77, [#allocation9], 64, 64, 4
    $region33: #{tpu_custom_call.1} parent=1 // pred_fallthru
      _
    // Predicated region
    $region34: #{tpu_custom_call.1} parent=1 // pred_check
      _
    $region35: #{tpu_custom_call.1} parent=1 // pred_check_branch
      %84 = sbr.rel (0) target = $region37
    $region36: #{tpu_custom_call.1} parent=1 // pred_region
      _
    $region37: #{tpu_custom_call.1} parent=1 // pred_fallthru
      _
    // Predicated region
    $region38: #{tpu_custom_call.1} parent=1 // pred_check
      _
    $region39: #{tpu_custom_call.1} parent=1 // pred_check_branch
      %86 = sbr.rel (0) target = $region41
    $region40: #{tpu_custom_call.1} parent=1 // pred_region
      %87 = dma.done [#allocation3], 128
    $region41: #{tpu_custom_call.1} parent=1 // pred_fallthru
      _
    // Predicated region
    $region42: #{tpu_custom_call.1} parent=1 // pred_check
      _
    $region43: #{tpu_custom_call.1} parent=1 // pred_check_branch
      %89 = sbr.rel (0) target = $region45
    $region44: #{tpu_custom_call.1} parent=1 // pred_region
      %90 = dma.done [#allocation6], 256
    $region45: #{tpu_custom_call.1} parent=1 // pred_fallthru
      _
    // Predicated region
    $region46: #{tpu_custom_call.1} parent=1 // pred_check
      _
    $region47: #{tpu_custom_call.1} parent=1 // pred_check_branch
      %92 = sbr.rel (0) target = $region49
    $region48: #{tpu_custom_call.1} parent=1 // pred_region
      %93 = dma.done [#allocation6], 256
    $region49: #{tpu_custom_call.1} parent=1 // pred_fallthru
      _
    // Predicated region
    $region50: #{tpu_custom_call.1} parent=1 // pred_check
      _
    $region51: #{tpu_custom_call.1} parent=1 // pred_check_branch
      %95 = sbr.rel (0) target = $region53
    $region52: #{tpu_custom_call.1} parent=1 // pred_region
      %96 = dma.done [#allocation9], 256
    $region53: #{tpu_custom_call.1} parent=1 // pred_fallthru
      _
    %v98 = vld [vmem:[#allocation2] sm:$0xf]
    %v99 = vld [vmem:[#allocation2 + $0x4] sm:$0xf]
    %v100 = vld [vmem:[#allocation5] sm:$0xf]
    %v101 = vld [vmem:[#allocation5 + $0x4] sm:$0xf]
    %v102 = vld [vmem:[#allocation5 + $0x8] sm:$0xf]
    %v103 = vld [vmem:[#allocation5 + $0xc] sm:$0xf]
    %v104 = vld [vmem:[%s2] sm:$0x1]
    %v106 = vlaneseq
    %v107 = vshrl.u32 %v106, 7
    %v108 = vsub.s32 0, %v107
    %v109 = vrot.slane %v104, %v108
    %v113 = vunpack.c.l.b16 %v98
    %v114 = vunpack.c.l.b16 %v99
    %v115 = vpack.c.b16 %v114, %v113
    %v120 = vunpack.c.l.b16 %v100
    %v121 = vunpack.c.l.b16 %v101
    %v122 = vunpack.c.l.b16 %v102
    %v123 = vunpack.c.l.b16 %v103
    %v124 = vpack.c.b16 %v121, %v120
    %v125 = vpack.c.b16 %v123, %v122
    %vm128 = vcmask 261120
    %v130 = vsel %vm128, %v115, 0
    %132 = vmatprep.subr.bf16.mxu0 0
    %133 = vmatpush1.bf16.msra.mxu0 %v124
    %134 = vmatprep.subr.bf16.mxu0 0
    %135 = vmatpush1.bf16.msra.mxu0 %v125
    %136 = vmatprep.subr.bf16.mxu0 0
    %137 = vmatpush1.bf16.msra.mxu0 0
    %138 = vmatprep.subr.bf16.mxu0 0
    %139 = vmatpush1.bf16.msra.mxu0 0
    %140 = vmatprep.subr.bf16.mxu0 0
    %141 = vmatpush1.bf16.msra.mxu0 0
    %142 = vmatprep.subr.bf16.mxu0 0
    %143 = vmatpush1.bf16.msra.mxu0 0
    %144 = vmatprep.subr.bf16.mxu0 0
    %145 = vmatpush1.bf16.msra.mxu0 0
    %146 = vmatprep.subr.bf16.mxu0 0
    %147 = vmatpush1.bf16.msra.mxu0 0
    %148 = vmatprep.subr.bf16.mxu0 0
    %149 = vmatpush1.bf16.msra.mxu0 0
    %150 = vmatprep.subr.bf16.mxu0 0
    %151 = vmatpush1.bf16.msra.mxu0 0
    %152 = vmatprep.subr.bf16.mxu0 0
    %153 = vmatpush1.bf16.msra.mxu0 0
    %154 = vmatprep.subr.bf16.mxu0 0
    %155 = vmatpush1.bf16.msra.mxu0 0
    %156 = vmatprep.subr.bf16.mxu0 0
    %157 = vmatpush1.bf16.msra.mxu0 0
    %158 = vmatprep.subr.bf16.mxu0 0
    %159 = vmatpush1.bf16.msra.mxu0 0
    %160 = vmatprep.subr.bf16.mxu0 0
    %161 = vmatpush1.bf16.msra.mxu0 0
    %162 = vmatprep.subr.bf16.mxu0 0
    %163 = vmatpush1.bf16.msra.mxu0 0
    %164 = vmatprep.mubr.bf16.mxu0 0
    %165 = vmatmul.mubr.bf16.gmra.mrb[0].mxu0 %v130
    %v166 = vpop.f32.mrb[0].mxu0
    %v167 = vadd.f32 %v109, %v166
    %v168 = vpop.f32.mrb[0].mxu0
    %v169 = vpop.f32.mrb[0].mxu0
    %v170 = vadd.f32 %v109, %v169
    %v171 = vpop.f32.mrb[0].mxu0
    %172 = vdwg.mxu0
    %175 = vrot.lane.b32.xlu0 %v167, 1
    %v176 = vpop.permute.xlu0 %175
    %177 = vrot.lane.b32.xlu0 %v170, 1
    %v178 = vpop.permute.xlu0 %177
    %vm181 = vcmp.gt.f32.partialorder %v167, %v176
    %vm182 = vcmp.gt.f32.partialorder %v170, %v178
    %v183 = vld [vmem:[#allocation7] sm:$0xf]
    %v184 = vld [vmem:[#allocation7 + $0x4] sm:$0xf]
    %v185 = vld [vmem:[#allocation7 + $0x8] sm:$0xf]
    %v186 = vld [vmem:[#allocation7 + $0xc] sm:$0xf]
    %v191 = vunpack.c.l.b16 %v183
    %v192 = vunpack.c.l.b16 %v184
    %v193 = vunpack.c.l.b16 %v185
    %v194 = vunpack.c.l.b16 %v186
    %v195 = vpack.c.b16 %v192, %v191
    %v196 = vpack.c.b16 %v194, %v193
    %199 = vmatprep.subr.bf16.mxu0 0
    %200 = vmatpush1.bf16.msra.mxu0 %v195
    %201 = vmatprep.subr.bf16.mxu0 0
    %202 = vmatpush1.bf16.msra.mxu0 %v196
    %203 = vmatprep.subr.bf16.mxu0 0
    %204 = vmatpush1.bf16.msra.mxu0 0
    %205 = vmatprep.subr.bf16.mxu0 0
    %206 = vmatpush1.bf16.msra.mxu0 0
    %207 = vmatprep.subr.bf16.mxu0 0
    %208 = vmatpush1.bf16.msra.mxu0 0
    %209 = vmatprep.subr.bf16.mxu0 0
    %210 = vmatpush1.bf16.msra.mxu0 0
    %211 = vmatprep.subr.bf16.mxu0 0
    %212 = vmatpush1.bf16.msra.mxu0 0
    %213 = vmatprep.subr.bf16.mxu0 0
    %214 = vmatpush1.bf16.msra.mxu0 0
    %215 = vmatprep.subr.bf16.mxu0 0
    %216 = vmatpush1.bf16.msra.mxu0 0
    %217 = vmatprep.subr.bf16.mxu0 0
    %218 = vmatpush1.bf16.msra.mxu0 0
    %219 = vmatprep.subr.bf16.mxu0 0
    %220 = vmatpush1.bf16.msra.mxu0 0
    %221 = vmatprep.subr.bf16.mxu0 0
    %222 = vmatpush1.bf16.msra.mxu0 0
    %223 = vmatprep.subr.bf16.mxu0 0
    %224 = vmatpush1.bf16.msra.mxu0 0
    %225 = vmatprep.subr.bf16.mxu0 0
    %226 = vmatpush1.bf16.msra.mxu0 0
    %227 = vmatprep.subr.bf16.mxu0 0
    %228 = vmatpush1.bf16.msra.mxu0 0
    %229 = vmatprep.subr.bf16.mxu0 0
    %230 = vmatpush1.bf16.msra.mxu0 0
    %231 = vmatprep.mubr.bf16.mxu0 0
    %232 = vmatmul.mubr.bf16.gmra.mrb[0].mxu0 %v130
    %v233 = vpop.f32.mrb[0].mxu0
    %v234 = vadd.f32 0.0, %v233
    %v235 = vpop.f32.mrb[0].mxu0
    %v236 = vpop.f32.mrb[0].mxu0
    %v237 = vadd.f32 0.0, %v236
    %v238 = vpop.f32.mrb[0].mxu0
    %239 = vdwg.mxu0
    %v240 = vld [vmem:[%s4] sm:$0x1]
    %v241 = vsel %vm181, 1, 0
    %v242 = vsel %vm182, 1, 0
    %243 = vset.pattern.permute.xlu0 1
    %244 = vperm.xlu0 %243, %v241
    %v245 = vpop.permute.xlu0 %244
    %246 = vset.pattern.permute.xlu0 1
    %247 = vperm.xlu0 %246, %v242
    %v248 = vpop.permute.xlu0 %247
    %vm249 = vcmp.eq.s32.totalorder %v245, 1
    %vm250 = vcmp.eq.s32.totalorder %v248, 1
    %v251 = vsel %vm249, 0.0, %v234
    %v252 = vsel %vm250, 0.0, %v237
    %v254 = vlaneseq
    %v255 = vshrl.u32 %v254, 7
    %v256 = vsub.s32 0, %v255
    %v257 = vrot.slane %v240, %v256
    %v259 = vadd.f32 %v251, %v257
    %v260 = vadd.f32 %v252, %v257
    %v261 = vpack.c.bf16 %v260, %v259
    %v263 = vunpack.c.l.b16 %v261
    %v264 = vunpack.c.h.b16 %v261
    %v265 = vpack.c.b16 %v263, %v263
    %v266 = vpack.c.b16 %v264, %v264
    %vm269 = vcmask 257024
    %270 = vst.msk [vmem:[#allocation10] sm:$0xf] %vm269, %v265
    %271 = vst.msk [vmem:[#allocation10 + $0x4] sm:$0xf] %vm269, %v266
    %v272 = vsel %vm249, %v234, 0.0
    %v273 = vsel %vm250, %v237, 0.0
    %v274 = vadd.f32 %v272, %v257
    %v275 = vadd.f32 %v273, %v257
    %v276 = vpack.c.bf16 %v275, %v274
    %v278 = vunpack.c.l.b16 %v276
    %v279 = vunpack.c.h.b16 %v276
    %v280 = vpack.c.b16 %v278, %v278
    %v281 = vpack.c.b16 %v279, %v279
    %284 = vst.msk [vmem:[#allocation14] sm:$0xf] %vm269, %v280
    %285 = vst.msk [vmem:[#allocation14 + $0x4] sm:$0xf] %vm269, %v281
    %v286 = vld [vmem:[%s5] sm:$0xf]
    %v287 = vld [vmem:[%s5 + $0x4] sm:$0xf]
    %v288 = vld [vmem:[%s5 + $0x8] sm:$0xf]
    %v289 = vld [vmem:[%s5 + $0xc] sm:$0xf]
    %v294 = vunpack.c.l.b16 %v286
    %v295 = vunpack.c.l.b16 %v287
    %v296 = vunpack.c.l.b16 %v288
    %v297 = vunpack.c.l.b16 %v289
    %v298 = vpack.c.b16 %v295, %v294
    %v299 = vpack.c.b16 %v297, %v296
    %302 = vmatprep.subr.bf16.mxu0 0
    %303 = vmatpush1.bf16.msra.mxu0 %v298
    %304 = vmatprep.subr.bf16.mxu0 0
    %305 = vmatpush1.bf16.msra.mxu0 %v299
    %306 = vmatprep.subr.bf16.mxu0 0
    %307 = vmatpush1.bf16.msra.mxu0 0
    %308 = vmatprep.subr.bf16.mxu0 0
    %309 = vmatpush1.bf16.msra.mxu0 0
    %310 = vmatprep.subr.bf16.mxu0 0
    %311 = vmatpush1.bf16.msra.mxu0 0
    %312 = vmatprep.subr.bf16.mxu0 0
    %313 = vmatpush1.bf16.msra.mxu0 0
    %314 = vmatprep.subr.bf16.mxu0 0
    %315 = vmatpush1.bf16.msra.mxu0 0
    %316 = vmatprep.subr.bf16.mxu0 0
    %317 = vmatpush1.bf16.msra.mxu0 0
    %318 = vmatprep.subr.bf16.mxu0 0
    %319 = vmatpush1.bf16.msra.mxu0 0
    %320 = vmatprep.subr.bf16.mxu0 0
    %321 = vmatpush1.bf16.msra.mxu0 0
    %322 = vmatprep.subr.bf16.mxu0 0
    %323 = vmatpush1.bf16.msra.mxu0 0
    %324 = vmatprep.subr.bf16.mxu0 0
    %325 = vmatpush1.bf16.msra.mxu0 0
    %326 = vmatprep.subr.bf16.mxu0 0
    %327 = vmatpush1.bf16.msra.mxu0 0
    %328 = vmatprep.subr.bf16.mxu0 0
    %329 = vmatpush1.bf16.msra.mxu0 0
    %330 = vmatprep.subr.bf16.mxu0 0
    %331 = vmatpush1.bf16.msra.mxu0 0
    %332 = vmatprep.subr.bf16.mxu0 0
    %333 = vmatpush1.bf16.msra.mxu0 0
    %334 = vmatprep.mubr.bf16.mxu0 0
    %335 = vmatmul.mubr.bf16.gmra.mrb[0].mxu0 %v130
    %v336 = vpop.f32.mrb[0].mxu0
    %v337 = vadd.f32 0.0, %v336
    %v338 = vpop.f32.mrb[0].mxu0
    %v339 = vpop.f32.mrb[0].mxu0
    %v340 = vadd.f32 0.0, %v339
    %v341 = vpop.f32.mrb[0].mxu0
    %342 = vdwg.mxu0
    %v343 = vld [vmem:[%s6] sm:$0x1]
    %v344 = vsel %vm249, 0.0, %v337
    %v345 = vsel %vm250, 0.0, %v340
    %v347 = vlaneseq
    %v348 = vshrl.u32 %v347, 7
    %v349 = vsub.s32 0, %v348
    %v350 = vrot.slane %v343, %v349
    %v352 = vadd.f32 %v344, %v350
    %v353 = vadd.f32 %v345, %v350
    %v354 = vpack.c.bf16 %v353, %v352
    %v356 = vunpack.c.l.b16 %v354
    %v357 = vunpack.c.h.b16 %v354
    %v358 = vpack.c.b16 %v356, %v356
    %v359 = vpack.c.b16 %v357, %v357
    %362 = vst.msk [vmem:[#allocation11] sm:$0xf] %vm269, %v358
    %363 = vst.msk [vmem:[#allocation11 + $0x4] sm:$0xf] %vm269, %v359
    %v364 = vsel %vm249, %v337, 0.0
    %v365 = vsel %vm250, %v340, 0.0
    %v366 = vadd.f32 %v364, %v350
    %v367 = vadd.f32 %v365, %v350
    %v368 = vpack.c.bf16 %v367, %v366
    %v370 = vunpack.c.l.b16 %v368
    %v371 = vunpack.c.h.b16 %v368
    %v372 = vpack.c.b16 %v370, %v370
    %v373 = vpack.c.b16 %v371, %v371
    %376 = vst.msk [vmem:[#allocation16] sm:$0xf] %vm269, %v372
    %377 = vst.msk [vmem:[#allocation16 + $0x4] sm:$0xf] %vm269, %v373
    %v378 = vld [vmem:[#allocation8] sm:$0xf]
    %v379 = vld [vmem:[#allocation8 + $0x4] sm:$0xf]
    %v380 = vld [vmem:[#allocation8 + $0x8] sm:$0xf]
    %v381 = vld [vmem:[#allocation8 + $0xc] sm:$0xf]
    %v386 = vunpack.c.l.b16 %v378
    %v387 = vunpack.c.l.b16 %v379
    %v388 = vunpack.c.l.b16 %v380
    %v389 = vunpack.c.l.b16 %v381
    %v390 = vpack.c.b16 %v387, %v386
    %v391 = vpack.c.b16 %v389, %v388
    %394 = vmatprep.subr.bf16.mxu0 0
    %395 = vmatpush1.bf16.msra.mxu0 %v390
    %396 = vmatprep.subr.bf16.mxu0 0
    %397 = vmatpush1.bf16.msra.mxu0 %v391
    %398 = vmatprep.subr.bf16.mxu0 0
    %399 = vmatpush1.bf16.msra.mxu0 0
    %400 = vmatprep.subr.bf16.mxu0 0
    %401 = vmatpush1.bf16.msra.mxu0 0
    %402 = vmatprep.subr.bf16.mxu0 0
    %403 = vmatpush1.bf16.msra.mxu0 0
    %404 = vmatprep.subr.bf16.mxu0 0
    %405 = vmatpush1.bf16.msra.mxu0 0
    %406 = vmatprep.subr.bf16.mxu0 0
    %407 = vmatpush1.bf16.msra.mxu0 0
    %408 = vmatprep.subr.bf16.mxu0 0
    %409 = vmatpush1.bf16.msra.mxu0 0
    %410 = vmatprep.subr.bf16.mxu0 0
    %411 = vmatpush1.bf16.msra.mxu0 0
    %412 = vmatprep.subr.bf16.mxu0 0
    %413 = vmatpush1.bf16.msra.mxu0 0
    %414 = vmatprep.subr.bf16.mxu0 0
    %415 = vmatpush1.bf16.msra.mxu0 0
    %416 = vmatprep.subr.bf16.mxu0 0
    %417 = vmatpush1.bf16.msra.mxu0 0
    %418 = vmatprep.subr.bf16.mxu0 0
    %419 = vmatpush1.bf16.msra.mxu0 0
    %420 = vmatprep.subr.bf16.mxu0 0
    %421 = vmatpush1.bf16.msra.mxu0 0
    %422 = vmatprep.subr.bf16.mxu0 0
    %423 = vmatpush1.bf16.msra.mxu0 0
    %424 = vmatprep.subr.bf16.mxu0 0
    %425 = vmatpush1.bf16.msra.mxu0 0
    %426 = vmatprep.mubr.bf16.mxu0 0
    %427 = vmatmul.mubr.bf16.gmra.mrb[0].mxu0 %v130
    %v428 = vpop.f32.mrb[0].mxu0
    %v429 = vadd.f32 0.0, %v428
    %v430 = vpop.f32.mrb[0].mxu0
    %v431 = vpop.f32.mrb[0].mxu0
    %v432 = vadd.f32 0.0, %v431
    %v433 = vpop.f32.mrb[0].mxu0
    %434 = vdwg.mxu0
    %v435 = vld [vmem:[%s8] sm:$0x1]
    %v436 = vsel %vm249, 0.0, %v429
    %v437 = vsel %vm250, 0.0, %v432
    %v439 = vlaneseq
    %v440 = vshrl.u32 %v439, 7
    %v441 = vsub.s32 0, %v440
    %v442 = vrot.slane %v435, %v441
    %v444 = vadd.f32 %v436, %v442
    %v445 = vadd.f32 %v437, %v442
    %v446 = vpack.c.bf16 %v445, %v444
    %v448 = vunpack.c.l.b16 %v446
    %v449 = vunpack.c.h.b16 %v446
    %v450 = vpack.c.b16 %v448, %v448
    %v451 = vpack.c.b16 %v449, %v449
    %454 = vst.msk [vmem:[#allocation13] sm:$0xf] %vm269, %v450
    %455 = vst.msk [vmem:[#allocation13 + $0x4] sm:$0xf] %vm269, %v451
    %v456 = vsel %vm249, %v429, 0.0
    %v457 = vsel %vm250, %v432, 0.0
    %v458 = vadd.f32 %v456, %v442
    %v459 = vadd.f32 %v457, %v442
    %v460 = vpack.c.bf16 %v459, %v458
    %v462 = vunpack.c.l.b16 %v460
    %v463 = vunpack.c.h.b16 %v460
    %v464 = vpack.c.b16 %v462, %v462
    %v465 = vpack.c.b16 %v463, %v463
    %468 = vst.msk [vmem:[#allocation17] sm:$0xf] %vm269, %v464
    %469 = vst.msk [vmem:[#allocation17 + $0x4] sm:$0xf] %vm269, %v465
    // Predicated region
    $region54: #{tpu_custom_call.1} parent=1 // pred_check
      _
    $region55: #{tpu_custom_call.1} parent=1 // pred_check_branch
      %471 = sbr.rel (0) target = $region57
    $region56: #{tpu_custom_call.1} parent=1 // pred_region
      %s473 = ssub.s32 128, 128
      %474 = vsyncadd [#allocation4], %s473
      %s475 = sshll.u32 [#allocation10], 4
      %s476 = int_to_ptr.vmem [resolvable:$true] %s475
      %481 = dma.vmem_to_hbm [thread:$0]  %s476, 128, %s9, [#allocation4], 64, 64, 4
    $region57: #{tpu_custom_call.1} parent=1 // pred_fallthru
      _
    // Predicated region
    $region58: #{tpu_custom_call.1} parent=1 // pred_check
      _
    $region59: #{tpu_custom_call.1} parent=1 // pred_check_branch
      %483 = sbr.rel (0) target = $region61
    $region60: #{tpu_custom_call.1} parent=1 // pred_region
      %s485 = ssub.s32 128, 128
      %486 = vsyncadd [#allocation12], %s485
      %s487 = sshll.u32 [#allocation11], 4
      %s488 = int_to_ptr.vmem [resolvable:$true] %s487
      %493 = dma.vmem_to_hbm [thread:$0]  %s488, 128, %s10, [#allocation12], 64, 64, 4
    $region61: #{tpu_custom_call.1} parent=1 // pred_fallthru
      _
    // Predicated region
    $region62: #{tpu_custom_call.1} parent=1 // pred_check
      _
    $region63: #{tpu_custom_call.1} parent=1 // pred_check_branch
      %495 = sbr.rel (0) target = $region65
    $region64: #{tpu_custom_call.1} parent=1 // pred_region
      %s497 = ssub.s32 128, 128
      %498 = vsyncadd [#allocation12], %s497
      %s499 = sshll.u32 [#allocation13], 4
      %s500 = int_to_ptr.vmem [resolvable:$true] %s499
      %505 = dma.vmem_to_hbm [thread:$0]  %s500, 128, %s11, [#allocation12], 64, 64, 4
    $region65: #{tpu_custom_call.1} parent=1 // pred_fallthru
      _
    // Predicated region
    $region66: #{tpu_custom_call.1} parent=1 // pred_check
      _
    $region67: #{tpu_custom_call.1} parent=1 // pred_check_branch
      %507 = sbr.rel (0) target = $region69
    $region68: #{tpu_custom_call.1} parent=1 // pred_region
      %s509 = ssub.s32 128, 128
      %510 = vsyncadd [#allocation15], %s509
      %s511 = sshll.u32 [#allocation14], 4
      %s512 = int_to_ptr.vmem [resolvable:$true] %s511
      %517 = dma.vmem_to_hbm [thread:$0]  %s512, 128, %s12, [#allocation15], 64, 64, 4
    $region69: #{tpu_custom_call.1} parent=1 // pred_fallthru
      _
    // Predicated region
    $region70: #{tpu_custom_call.1} parent=1 // pred_check
      _
    $region71: #{tpu_custom_call.1} parent=1 // pred_check_branch
      %519 = sbr.rel (0) target = $region73
    $region72: #{tpu_custom_call.1} parent=1 // pred_region
      %s521 = ssub.s32 128, 128
      %522 = vsyncadd [#allocation15], %s521
      %s523 = sshll.u32 [#allocation16], 4
      %s524 = int_to_ptr.vmem [resolvable:$true] %s523
      %529 = dma.vmem_to_hbm [thread:$0]  %s524, 128, %s13, [#allocation15], 64, 64, 4
    $region73: #{tpu_custom_call.1} parent=1 // pred_fallthru
      _
    // Predicated region
    $region74: #{tpu_custom_call.1} parent=1 // pred_check
      _
    $region75: #{tpu_custom_call.1} parent=1 // pred_check_branch
      %531 = sbr.rel (0) target = $region77
    $region76: #{tpu_custom_call.1} parent=1 // pred_region
      %s533 = ssub.s32 128, 128
      %534 = vsyncadd [#allocation18], %s533
      %s535 = sshll.u32 [#allocation17], 4
      %s536 = int_to_ptr.vmem [resolvable:$true] %s535
      %541 = dma.vmem_to_hbm [thread:$0]  %s536, 128, %s14, [#allocation18], 64, 64, 4
    $region77: #{tpu_custom_call.1} parent=1 // pred_fallthru
      _
    // Predicated region
    $region78: #{tpu_custom_call.1} parent=1 // pred_check
      _
    $region79: #{tpu_custom_call.1} parent=1 // pred_check_branch
      %543 = sbr.rel (0) target = $region81
    $region80: #{tpu_custom_call.1} parent=1 // pred_region
      %544 = dma.done [#allocation4], 128
    $region81: #{tpu_custom_call.1} parent=1 // pred_fallthru
      _
    // Predicated region
    $region82: #{tpu_custom_call.1} parent=1 // pred_check
      _
    $region83: #{tpu_custom_call.1} parent=1 // pred_check_branch
      %546 = sbr.rel (0) target = $region85
    $region84: #{tpu_custom_call.1} parent=1 // pred_region
      %547 = dma.done [#allocation12], 128
    $region85: #{tpu_custom_call.1} parent=1 // pred_fallthru
      _
    // Predicated region
    $region86: #{tpu_custom_call.1} parent=1 // pred_check
      _
    $region87: #{tpu_custom_call.1} parent=1 // pred_check_branch
      %549 = sbr.rel (0) target = $region89
    $region88: #{tpu_custom_call.1} parent=1 // pred_region
      %550 = dma.done [#allocation12], 128
    $region89: #{tpu_custom_call.1} parent=1 // pred_fallthru
      _
    // Predicated region
    $region90: #{tpu_custom_call.1} parent=1 // pred_check
      _
    $region91: #{tpu_custom_call.1} parent=1 // pred_check_branch
      %552 = sbr.rel (0) target = $region93
    $region92: #{tpu_custom_call.1} parent=1 // pred_region
      %553 = dma.done [#allocation15], 128
    $region93: #{tpu_custom_call.1} parent=1 // pred_fallthru
      _
    // Predicated region
    $region94: #{tpu_custom_call.1} parent=1 // pred_check
      _
    $region95: #{tpu_custom_call.1} parent=1 // pred_check_branch
      %555 = sbr.rel (0) target = $region97
    $region96: #{tpu_custom_call.1} parent=1 // pred_region
      %556 = dma.done [#allocation15], 128
    $region97: #{tpu_custom_call.1} parent=1 // pred_fallthru
      _
    // Predicated region
    $region98: #{tpu_custom_call.1} parent=1 // pred_check
      _
    $region99: #{tpu_custom_call.1} parent=1 // pred_check_branch
      %558 = sbr.rel (0) target = $region101
    $region100: #{tpu_custom_call.1} parent=1 // pred_region
      %559 = dma.done [#allocation18], 128
    $region101: #{tpu_custom_call.1} parent=1 // pred_fallthru
      _
    %560 = vsyncpa [#allocation3], 1
    %561 = vsyncpa [#allocation6], 1
    %562 = vsyncpa [#allocation9], 1
    %563 = vsyncpa [#allocation4], 1
    %564 = vsyncpa [#allocation12], 1
    %565 = vsyncpa [#allocation15], 1
    %566 = vsyncpa [#allocation18], 1

</llo_original>
